<compile_context>
chip_gen: v7x
topology: tpu7x:2x2x1
jax: 0.10.0
libtpu: 0.0.40
codegen_flags: <defaults>
</compile_context>

<pallas_src>
import jax
import jax.numpy as jnp
from jax.experimental import pallas as pl
from jax.experimental.pallas import tpu as pltpu

INPUT_N = 4
HIDDEN_N = 10
OUTPUT_N = 2


def _round_up(n, m):
    return ((n + m - 1) // m) * m


# --------------------------------------------------------------------------
# Kernels
# --------------------------------------------------------------------------
def affine_rows_kernel(x_ref, w_ref, b_ref, o_ref):
    # (block_b, 4) @ (4, 2) + (1, 2).  K is tiny so MXU utilization is low,
    # but the kernel is HBM/DMA-bound, so routing through the MXU vs. a
    # hand-unrolled VPU FMA does not change wall time.
    y = jnp.dot(x_ref[...], w_ref[...], preferred_element_type=jnp.float32)
    o_ref[...] = (y + b_ref[...]).astype(o_ref.dtype)


def affine_feature_major_kernel(xT_ref, wT_ref, bT_ref, oT_ref):
    # (2, 4) @ (4, block_l) + (2, 1): every block's last dim is a multiple of
    # 128, so input DMAs and output stores are fully lane-dense.
    y = jnp.dot(wT_ref[...], xT_ref[...], preferred_element_type=jnp.float32)
    oT_ref[...] = (y + bT_ref[...]).astype(oT_ref.dtype)


# --------------------------------------------------------------------------
# Wrappers
# --------------------------------------------------------------------------
def _default_row_block(batch):
    # v7x has 64 MiB VMEM per TensorCore -> keep the conservative 8192 cap
    # there; v4/v5e/v6e (128 MiB) tolerate larger tiles (fewer grid steps).
    cap = 8192
    try:
        kind = jax.devices()[0].device_kind.lower()
        if ("v4" in kind) or ("v5" in kind) or ("v6" in kind):
            cap = 16384
    except Exception:
        pass
    # At least 2 grid steps so the "parallel" axis feeds both v7x TensorCores.
    blk = _round_up(max(pl.cdiv(batch, 2), 256), 256)
    return min(cap, blk)


def mlp_policy_forward(x, w1, b1, w2, b2, *, block_b=None, min_pallas_batch=2048):
    """MLPPolicy.forward: x (B, 4) f32 -> (B, 2) f32.

    w1: (4, 10), b1: (10,), w2: (10, 2), b2: (2,)  (weights stored (in, out)).
    Since the module has no activation, the two layers fold into one affine
    map computed by the kernel.
    """
    B = x.shape[0]
    wf = w1 @ w2                 # (4, 2) folded weight
    bf = b1 @ w2 + b2            # (2,)  folded bias

    if B < min_pallas_batch:
        # Small-batch fallback: pallas_call overhead dwarfs ~1 us of traffic.
        return (x @ w1 + b1) @ w2 + b2

    if block_b is None:
        block_b = _default_row_block(B)
    block_b = max(8, _round_up(block_b, 8))        # (8, _) sublane divisibility
    block_b = min(block_b, _round_up(B, 8))        # don't exceed the batch

    grid = (pl.cdiv(B, block_b),)                  # partial tail block is masked

    # Derived VMEM budget: x and out blocks are lane-padded to 128 f32 lanes,
    # each double-buffered, plus weights/slack.  (pl.Buffered(3) on x could be
    # added if DMA is still exposed; footprint leaves ample headroom.)
    lane_padded_row_bytes = 128 * 4
    footprint = 4 * block_b * lane_padded_row_bytes + (1 << 20)
    vmem_limit = int(min(max(footprint, 4 << 20), 48 << 20))

    grid_spec = pltpu.PrefetchScalarGridSpec(
        num_scalar_prefetch=0,
        grid=grid,
        in_specs=[
            # batch-tiled activations
            pl.BlockSpec((block_b, INPUT_N), lambda i: (i, 0)),
            # VMEM-resident folded weight / bias (same block every step)
            pl.BlockSpec((INPUT_N, OUTPUT_N), lambda i: (0, 0)),
            pl.BlockSpec((1, OUTPUT_N), lambda i: (0, 0)),
        ],
        out_specs=pl.BlockSpec((block_b, OUTPUT_N), lambda i: (i, 0)),
    )

    return pl.pallas_call(
        affine_rows_kernel,
        out_shape=jax.ShapeDtypeStruct((B, OUTPUT_N), jnp.float32),
        grid_spec=grid_spec,
        compiler_params=pltpu.CompilerParams(
            dimension_semantics=("parallel",),     # megacore sharding on v7x
            vmem_limit_bytes=vmem_limit,
        ),
    )(x, wf, bf.reshape(1, OUTPUT_N))


def mlp_policy_forward_feature_major(xT, w1, b1, w2, b2, *, block_l=None):
    """Lane-dense fast path: xT (4, B) f32 -> (2, B) f32.

    For producers/consumers that can supply/accept the (features, batch)
    layout, every block's last dim is a multiple of 128: dense HBM<->VMEM
    DMAs and unmasked output stores.
    """
    B = xT.shape[1]
    wTf = (w1 @ w2).T                              # (2, 4)
    bT = (b1 @ w2 + b2).reshape(OUTPUT_N, 1)       # (2, 1)

    if block_l is None:
        block_l = min(8192, _round_up(max(pl.cdiv(B, 2), 128), 128))
    block_l = max(128, _round_up(block_l, 128))    # lane divisibility
    block_l = min(block_l, _round_up(B, 128))

    grid = (pl.cdiv(B, block_l),)

    # x and out blocks sublane-pad 4/2 -> 8 rows; double-buffered each.
    footprint = 4 * 8 * block_l * 4 + (1 << 20)
    vmem_limit = int(min(max(footprint, 4 << 20), 48 << 20))

    grid_spec = pltpu.PrefetchScalarGridSpec(
        num_scalar_prefetch=0,
        grid=grid,
        in_specs=[
            pl.BlockSpec((INPUT_N, block_l), lambda i: (0, i)),
            pl.BlockSpec((OUTPUT_N, INPUT_N), lambda i: (0, 0)),
            pl.BlockSpec((OUTPUT_N, 1), lambda i: (0, 0)),
        ],
        out_specs=pl.BlockSpec((OUTPUT_N, block_l), lambda i: (0, i)),
    )

    return pl.pallas_call(
        affine_feature_major_kernel,
        out_shape=jax.ShapeDtypeStruct((OUTPUT_N, B), jnp.float32),
        grid_spec=grid_spec,
        compiler_params=pltpu.CompilerParams(
            dimension_semantics=("parallel",),
            vmem_limit_bytes=vmem_limit,
        ),
    )(xT, wTf, bT)


def init_linear(key, fan_in, fan_out):
    # Mirror torch.nn.Linear default init: U(-1/sqrt(fan_in), 1/sqrt(fan_in)).
    kw, kb = jax.random.split(key)
    bound = 1.0 / jnp.sqrt(float(fan_in))
    # Stored (in, out) relative to PyTorch's (out, in) so the math is x @ W.
    w = jax.random.uniform(kw, (fan_in, fan_out), jnp.float32, -bound, bound)
    b = jax.random.uniform(kb, (fan_out,), jnp.float32, -bound, bound)
    return w, b


if __name__ == "__main__":
    key = jax.random.PRNGKey(0)
    k_x, k_fc1, k_fc2, k_x2 = jax.random.split(key, 4)

    w1, b1 = init_linear(k_fc1, INPUT_N, HIDDEN_N)
    w2, b2 = init_linear(k_fc2, HIDDEN_N, OUTPUT_N)

    def ref_fwd(x):
        return (x @ w1 + b1) @ w2 + b2

    # 1) Typical policy-eval shape: small batch -> jnp fallback path.
    x_small = jax.random.normal(k_x, (8, INPUT_N), dtype=jnp.float32)
    out_small = jax.block_until_ready(mlp_policy_forward(x_small, w1, b1, w2, b2))
    assert out_small.shape == (8, OUTPUT_N)
    assert jnp.allclose(out_small, ref_fwd(x_small), atol=1e-4, rtol=1e-4)

    # 2) Pallas row-major path: non-multiple batch exercises the masked
    #    partial tail block (no wrapper-side pad pass).
    B2 = 1000
    x2 = jax.random.normal(k_x2, (B2, INPUT_N), dtype=jnp.float32)
    out2 = jax.block_until_ready(
        mlp_policy_forward(x2, w1, b1, w2, b2, block_b=256, min_pallas_batch=0))
    assert out2.shape == (B2, OUTPUT_N)
    assert jnp.allclose(out2, ref_fwd(x2), atol=1e-4, rtol=1e-4)

    # 3) Lane-dense feature-major path (caller supplies/accepts (features, B)).
    xT2 = x2.T
    outT2 = jax.block_until_ready(
        mlp_policy_forward_feature_major(xT2, w1, b1, w2, b2, block_l=256))
    assert outT2.shape == (OUTPUT_N, B2)
    assert jnp.allclose(outT2.T, ref_fwd(x2), atol=1e-4, rtol=1e-4)

    print("KERNEL_OK")
</pallas_src>

<mosaic_0001>
module attributes {stable_mosaic.version = 11 : i64} {
  func.func @affine_rows_kernel(%arg0: i32, %arg1: memref<256x4xf32, #tpu.memory_space<vmem>>, %arg2: memref<4x2xf32, #tpu.memory_space<vmem>>, %arg3: memref<1x2xf32, #tpu.memory_space<vmem>>, %arg4: memref<256x2xf32, #tpu.memory_space<vmem>>) attributes {dimension_semantics = [#tpu.dimension_semantics<parallel>], iteration_bounds = array<i64: 4>, scalar_prefetch = 0 : i64, scratch_operands = 0 : i64, tpu.core_type = #tpu.core_type<tc>, window_params = [{transform_indices = @transform_0, window_bounds = array<i64: 256, 4>}, {pipeline_mode = #tpu.pipeline_mode<synchronous>, transform_indices = @transform_1, window_bounds = array<i64: 4, 2>}, {pipeline_mode = #tpu.pipeline_mode<synchronous>, transform_indices = @transform_2, window_bounds = array<i64: 1, 2>}, {transform_indices = @transform_3, window_bounds = array<i64: 256, 2>}]} {
    %c0 = arith.constant 0 : index
    %c0_0 = arith.constant 0 : index
    %0 = vector.load %arg1[%c0, %c0_0] : memref<256x4xf32, #tpu.memory_space<vmem>>, vector<256x4xf32>
    %c0_1 = arith.constant 0 : index
    %c0_2 = arith.constant 0 : index
    %1 = vector.load %arg2[%c0_1, %c0_2] : memref<4x2xf32, #tpu.memory_space<vmem>>, vector<4x2xf32>
    %cst = arith.constant dense<0.000000e+00> : vector<256x2xf32>
    %2 = tpu.matmul %0, %1, %cst {dimension_numbers = #tpu.dot_dimension_numbers<[1], [0], [0], [1], [0, 0, 1, 1], [], []>} : vector<256x4xf32>, vector<4x2xf32>, vector<256x2xf32> -> vector<256x2xf32>
    %c0_3 = arith.constant 0 : index
    %c0_4 = arith.constant 0 : index
    %3 = vector.load %arg3[%c0_3, %c0_4] : memref<1x2xf32, #tpu.memory_space<vmem>>, vector<1x2xf32>
    %4 = vector.broadcast %3 : vector<1x2xf32> to vector<256x2xf32>
    %5 = arith.addf %2, %4 : vector<256x2xf32>
    %c0_5 = arith.constant 0 : index
    %c0_6 = arith.constant 0 : index
    %6 = vector.load %arg4[%c0_5, %c0_6] : memref<256x2xf32, #tpu.memory_space<vmem>>, vector<256x2xf32>
    tpu.vector_store %arg4[%c0_5, %c0_6], %5 {strides = array<i32>} : memref<256x2xf32, #tpu.memory_space<vmem>>, vector<256x2xf32>,
    return
  }
  func.func @transform_0(%arg0: i32) -> (i32, i32) {
    %c0_i32 = arith.constant 0 : i32
    %c0_i32_0 = arith.constant 0 : i32
    return %arg0, %c0_i32 : i32, i32
  }
  func.func @transform_1(%arg0: i32) -> (i32, i32) {
    %c0_i32 = arith.constant 0 : i32
    %c0_i32_0 = arith.constant 0 : i32
    %c0_i32_1 = arith.constant 0 : i32
    return %c0_i32, %c0_i32_0 : i32, i32
  }
  func.func @transform_2(%arg0: i32) -> (i32, i32) {
    %c0_i32 = arith.constant 0 : i32
    %c0_i32_0 = arith.constant 0 : i32
    %c0_i32_1 = arith.constant 0 : i32
    return %c0_i32, %c0_i32_0 : i32, i32
  }
  func.func @transform_3(%arg0: i32) -> (i32, i32) {
    %c0_i32 = arith.constant 0 : i32
    %c0_i32_0 = arith.constant 0 : i32
    return %arg0, %c0_i32 : i32, i32
  }
}

</mosaic_0001>

<llo_original>
// kernel: tpu_custom_call.1
$region0: #{tpu_custom_call.1}
  #allocation0 [shape = 'u32[]', space=smem, size = 0x4, offset = 0x4, fixed_abs, tag = 'smem constant byte address 0x4 - core index']
  #allocation1 [shape = 'u32[144,128]{1,0:T(1,128)}', space=vmem, size = 0x12000, scoped, tag = 'internal scratch']
  %s0 = inlined_call_operand.vmem [shape: f32[1000,4], index: 0, kind: input, shape index: {}]
  %s1 = inlined_call_operand.vmem [shape: f32[4,2], index: 1, kind: input, shape index: {}]
  %s2 = inlined_call_operand.vmem [shape: f32[1,2], index: 2, kind: input, shape index: {}]
  %s3 = inlined_call_operand.vmem [shape: f32[1000,2], index: 3, kind: output, shape index: {}]
  %s4 = sld [smem:[#allocation0]]
  $region93: #{tpu_custom_call.1} parent=0
    _
  %s6 = ssub.s32 1, %s4
  %s7 = scalar_select 0, %s6, %s4
  $region1: #{tpu_custom_call.1} parent=0
    #allocation2 [shape = 'u8[262144]{0}', space=vmem, size = 0x40000, scoped, tag = 'output window, operand 0']
    loop: start=0, step=1, limit=6
    $region2: #{tpu_custom_call.1} parent=1 // loop_pre_header
      _
    $region3: #{tpu_custom_call.1} parent=1 // loop_header
      %s9 = sphi 0, %s13
      %p10 = scmp.ge.s32.totalorder %s9, 6
      %s19 = sphi 0, %s21
      %s22 = sphi 0, %s19
      %s23 = sphi 0, %s22
      %s39 = sphi 0, %s23
      %s43 = sphi 0, %s43
      %s45 = sphi 0, %s43
      %s46 = sphi 0, %s45
      %s60 = sphi 0, %s46
      %s64 = sphi 0, %s64
      %s66 = sphi 0, %s64
      %s67 = sphi 0, %s66
      %s81 = sphi 0, %s67
      %s87 = sphi 0, %s89
      %s90 = sphi 0, %s87
      %s91 = sphi 0, %s90
      %s107 = sphi 0, %s91
    $region4: #{tpu_custom_call.1} parent=1 // loop_header_branch
      %12 = sbr.rel (%p10) target = $region8
    $region5: #{tpu_custom_call.1} parent=1 // loop_body
      %s14 = ssub.s32 %s9, 1
      %s15 = ssub.s32 %s9, 2
      %s16 = sadd.s32 %s9, 1
      %s17 = ssub.s32 %s9, %s16
      %p18 = scmp.eq.s32.totalorder %s17, 0
      %s20 = sadd.s32 %s19, 1
      %s21 = scalar_select %p18, %s19, %s20
      %p24 = pneg %p18
      %p25 = scmp.eq.s32.totalorder %s9, 3
      %p26 = por %p24, %p25
      %p27 = scmp.ne.s32.totalorder %s19, %s22
      %p28 = scmp.eq.s32.totalorder %s9, 0
      %p29 = por %p27, %p28
      %p30 = scmp.ne.s32.totalorder %s19, %s22
      %p31 = scmp.eq.s32.totalorder %s14, 3
      %p32 = por %p30, %p31
      %p33 = scmp.ne.s32.totalorder %s22, %s23
      %p34 = scmp.eq.s32.totalorder %s14, 0
      %p35 = por %p33, %p34
      %p36 = scmp.ne.s32.totalorder %s22, %s23
      %p37 = scmp.eq.s32.totalorder %s15, 3
      %p38 = por %p36, %p37
      %p40 = scmp.ne.s32.totalorder %s23, %s39
      %p41 = scmp.eq.s32.totalorder %s15, 0
      %p42 = por %p40, %p41
      %s44 = sadd.s32 %s43, 1
      %p47 = scmp.eq.s32.totalorder %s9, 3
      %p48 = scmp.ne.s32.totalorder %s43, %s45
      %p49 = scmp.eq.s32.totalorder %s9, 0
      %p50 = por %p48, %p49
      %p51 = scmp.ne.s32.totalorder %s43, %s45
      %p52 = scmp.eq.s32.totalorder %s14, 3
      %p53 = por %p51, %p52
      %p54 = scmp.ne.s32.totalorder %s45, %s46
      %p55 = scmp.eq.s32.totalorder %s14, 0
      %p56 = por %p54, %p55
      %p57 = scmp.ne.s32.totalorder %s45, %s46
      %p58 = scmp.eq.s32.totalorder %s15, 3
      %p59 = por %p57, %p58
      %p61 = scmp.ne.s32.totalorder %s46, %s60
      %p62 = scmp.eq.s32.totalorder %s15, 0
      %p63 = por %p61, %p62
      %s65 = sadd.s32 %s64, 1
      %p68 = scmp.eq.s32.totalorder %s9, 3
      %p69 = scmp.ne.s32.totalorder %s64, %s66
      %p70 = scmp.eq.s32.totalorder %s9, 0
      %p71 = por %p69, %p70
      %p72 = scmp.ne.s32.totalorder %s64, %s66
      %p73 = scmp.eq.s32.totalorder %s14, 3
      %p74 = por %p72, %p73
      %p75 = scmp.ne.s32.totalorder %s66, %s67
      %p76 = scmp.eq.s32.totalorder %s14, 0
      %p77 = por %p75, %p76
      %p78 = scmp.ne.s32.totalorder %s66, %s67
      %p79 = scmp.eq.s32.totalorder %s15, 3
      %p80 = por %p78, %p79
      %p82 = scmp.ne.s32.totalorder %s67, %s81
      %p83 = scmp.eq.s32.totalorder %s15, 0
      %p84 = por %p82, %p83
      %s85 = ssub.s32 %s9, %s16
      %p86 = scmp.eq.s32.totalorder %s85, 0
      %s88 = sadd.s32 %s87, 1
      %s89 = scalar_select %p86, %s87, %s88
      %p92 = pneg %p86
      %p93 = scmp.eq.s32.totalorder %s9, 3
      %p94 = por %p92, %p93
      %p95 = scmp.ne.s32.totalorder %s87, %s90
      %p96 = scmp.eq.s32.totalorder %s9, 0
      %p97 = por %p95, %p96
      %p98 = scmp.ne.s32.totalorder %s87, %s90
      %p99 = scmp.eq.s32.totalorder %s14, 3
      %p100 = por %p98, %p99
      %p101 = scmp.ne.s32.totalorder %s90, %s91
      %p102 = scmp.eq.s32.totalorder %s14, 0
      %p103 = por %p101, %p102
      %p104 = scmp.ne.s32.totalorder %s90, %s91
      %p105 = scmp.eq.s32.totalorder %s15, 3
      %p106 = por %p104, %p105
      %p108 = scmp.ne.s32.totalorder %s91, %s107
      %p109 = scmp.eq.s32.totalorder %s15, 0
      %p110 = por %p108, %p109
      %p111 = scmp.le.s32.totalorder 1, %s9
      %p112 = scmp.lt.s32.totalorder %s9, 5
      %p113 = pnand %p111, %p112
      %p114 = pneg %p113
      // Predicated region
      $region9: #{tpu_custom_call.1} parent=5 // pred_check
        _
      $region10: #{tpu_custom_call.1} parent=5 // pred_check_branch
        %116 = sbr.rel (%p113) target = $region12
      $region11: #{tpu_custom_call.1} parent=5 // pred_region
        %s117 = ssub.s32 %s9, 1
        // Predicated region
        $region13: #{tpu_custom_call.1} parent=11 // pred_check
          %p118 = pneg %p56
        $region14: #{tpu_custom_call.1} parent=11 // pred_check_branch
          %120 = sbr.rel (%p118) target = $region16
        $region15: #{tpu_custom_call.1} parent=11 // pred_region
          _
        $region16: #{tpu_custom_call.1} parent=11 // pred_fallthru
          _
        // Predicated region
        $region17: #{tpu_custom_call.1} parent=11 // pred_check
          %p121 = pneg %p77
        $region18: #{tpu_custom_call.1} parent=11 // pred_check_branch
          %123 = sbr.rel (%p121) target = $region20
        $region19: #{tpu_custom_call.1} parent=11 // pred_region
          _
        $region20: #{tpu_custom_call.1} parent=11 // pred_fallthru
          _
      $region12: #{tpu_custom_call.1} parent=5 // pred_fallthru
        _
      %p124 = scmp.lt.s32.totalorder %s9, 4
      // Predicated region
      $region21: #{tpu_custom_call.1} parent=5 // pred_check
        %p125 = pneg %p124
      $region22: #{tpu_custom_call.1} parent=5 // pred_check_branch
        %127 = sbr.rel (%p125) target = $region24
      $region23: #{tpu_custom_call.1} parent=5 // pred_region
        // Predicated region
        $region25: #{tpu_custom_call.1} parent=23 // pred_check
          %p128 = pneg %p29
        $region26: #{tpu_custom_call.1} parent=23 // pred_check_branch
          %130 = sbr.rel (%p128) target = $region28
        $region27: #{tpu_custom_call.1} parent=23 // pred_region
          %s131 = smul.u32 32, %s9
          %s132 = ssub.s32 125, %s131
          %p133 = scmp.lt.s32.totalorder %s132, 32
          %s134 = scalar_select %p133, %s132, 32
          %s135 = smul.u32 128, %s134
          %p136 = scmp.lt.s32.totalorder %s131, 124
          %s137 = scalar_select %p136, %s131, 124
          %s138 = smul.addr %s137, 8
          %s139 = scalar_lea.vmem %s0, %s138
          %s140 = smul.u32 32, %s9
          %s141 = ssub.s32 125, %s140
          %p142 = scmp.lt.s32.totalorder %s141, 32
          %s143 = scalar_select %p142, %s141, 32
          %s144 = smul.u32 128, %s143
        $region28: #{tpu_custom_call.1} parent=23 // pred_fallthru
          _
      $region24: #{tpu_custom_call.1} parent=5 // pred_fallthru
        _
      %p145 = scmp.le.s32.totalorder 1, %s9
      %p146 = scmp.lt.s32.totalorder %s9, 5
      %p147 = pnand %p145, %p146
      %p148 = pneg %p147
      // Predicated region
      $region29: #{tpu_custom_call.1} parent=5 // pred_check
        _
      $region30: #{tpu_custom_call.1} parent=5 // pred_check_branch
        %150 = sbr.rel (%p147) target = $region32
      $region31: #{tpu_custom_call.1} parent=5 // pred_region
        %s151 = ssub.s32 %s9, 1
        %s152 = smul.u32 32, %s14
        %s153 = ssub.s32 125, %s152
        %p154 = scmp.lt.s32.totalorder %s153, 32
        %s155 = scalar_select %p154, %s153, 32
        %s156 = smul.u32 128, %s155
        %p157 = scmp.lt.s32.totalorder %s152, 124
        %s158 = scalar_select %p157, %s152, 124
        %s159 = smul.addr %s158, 8
        %s160 = scalar_lea.vmem %s0, %s159
        %p161 = pneg %p35
        %p162 = pneg %p32
        %p163 = pneg %p56
        %p164 = pneg %p53
        %p165 = pneg %p77
        %p166 = pneg %p74
        %p167 = pneg %p103
        %p168 = pneg %p100
        %s169 = sand.u32 %s90, 1
        %s170 = sand.u32 %s90, 1
        %s171 = smul.addr %s170, 256
        %s172 = scalar_lea.vmem [#allocation2], %s171
        %s173 = smul.u32 32, %s14
        %s174 = ssub.s32 125, %s173
        %p175 = scmp.lt.s32.totalorder %s174, 32
        %s176 = scalar_select %p175, %s174, 32
        %s177 = smul.u32 128, %s176
        %p178 = scmp.lt.s32.totalorder %s173, 124
        %s179 = scalar_select %p178, %s173, 124
        %s180 = smul.addr %s179, 8
        %s181 = scalar_lea.vmem %s0, %s180
        %s182 = smul.u32 32, %s14
        %s183 = ssub.s32 125, %s182
        %p184 = scmp.lt.s32.totalorder %s183, 32
        %s185 = scalar_select %p184, %s183, 32
        %s186 = smul.u32 128, %s185
        %s187 = smul.u32 32, %s14
        %s188 = ssub.s32 125, %s187
        %p189 = scmp.lt.s32.totalorder %s188, 32
        %s190 = scalar_select %p189, %s188, 32
        %s191 = smul.u32 128, %s190
        %v192 = vld [vmem:[%s181] sm:$0xff]
        %v193 = vld [vmem:[%s181 + $0x8] sm:$0xff]
        %v194 = vld [vmem:[%s181 + $0x10] sm:$0xff]
        %v195 = vld [vmem:[%s181 + $0x18] sm:$0xff]
        %v196 = vld [vmem:[%s181 + $0x20] sm:$0xff]
        %v197 = vld [vmem:[%s181 + $0x28] sm:$0xff]
        %v198 = vld [vmem:[%s181 + $0x30] sm:$0xff]
        %v199 = vld [vmem:[%s181 + $0x38] sm:$0xff]
        %v200 = vld [vmem:[%s181 + $0x40] sm:$0xff]
        %v201 = vld [vmem:[%s181 + $0x48] sm:$0xff]
        %v202 = vld [vmem:[%s181 + $0x50] sm:$0xff]
        %v203 = vld [vmem:[%s181 + $0x58] sm:$0xff]
        %v204 = vld [vmem:[%s181 + $0x60] sm:$0xff]
        %v205 = vld [vmem:[%s181 + $0x68] sm:$0xff]
        %v206 = vld [vmem:[%s181 + $0x70] sm:$0xff]
        %v207 = vld [vmem:[%s181 + $0x78] sm:$0xff]
        %v208 = vld [vmem:[%s181 + $0x80] sm:$0xff]
        %v209 = vld [vmem:[%s181 + $0x88] sm:$0xff]
        %v210 = vld [vmem:[%s181 + $0x90] sm:$0xff]
        %v211 = vld [vmem:[%s181 + $0x98] sm:$0xff]
        %v212 = vld [vmem:[%s181 + $0xa0] sm:$0xff]
        %v213 = vld [vmem:[%s181 + $0xa8] sm:$0xff]
        %v214 = vld [vmem:[%s181 + $0xb0] sm:$0xff]
        %v215 = vld [vmem:[%s181 + $0xb8] sm:$0xff]
        %v216 = vld [vmem:[%s181 + $0xc0] sm:$0xff]
        %v217 = vld [vmem:[%s181 + $0xc8] sm:$0xff]
        %v218 = vld [vmem:[%s181 + $0xd0] sm:$0xff]
        %v219 = vld [vmem:[%s181 + $0xd8] sm:$0xff]
        %v220 = vld [vmem:[%s181 + $0xe0] sm:$0xff]
        %v221 = vld [vmem:[%s181 + $0xe8] sm:$0xff]
        %v222 = vld [vmem:[%s181 + $0xf0] sm:$0xff]
        %v223 = vld [vmem:[%s181 + $0xf8] sm:$0xff]
        %v224 = vld [vmem:[%s1] sm:$0xf]
        %v225 = vld [vmem:[%s2] sm:$0x1]
        %v227 = vlaneseq
        %v228 = vshrl.u32 %v227, 7
        %v229 = vsub.s32 0, %v228
        %v230 = vrot.slane %v225, %v229
        %vm232 = vcmask 31744
        %v234 = vsel %vm232, %v192, 0
        %v237 = vsel %vm232, %v193, 0
        %v240 = vsel %vm232, %v194, 0
        %v243 = vsel %vm232, %v195, 0
        %v246 = vsel %vm232, %v196, 0
        %v249 = vsel %vm232, %v197, 0
        %v252 = vsel %vm232, %v198, 0
        %v255 = vsel %vm232, %v199, 0
        %v258 = vsel %vm232, %v200, 0
        %v261 = vsel %vm232, %v201, 0
        %v264 = vsel %vm232, %v202, 0
        %v267 = vsel %vm232, %v203, 0
        %v270 = vsel %vm232, %v204, 0
        %v273 = vsel %vm232, %v205, 0
        %v276 = vsel %vm232, %v206, 0
        %v279 = vsel %vm232, %v207, 0
        %v282 = vsel %vm232, %v208, 0
        %v285 = vsel %vm232, %v209, 0
        %v288 = vsel %vm232, %v210, 0
        %v291 = vsel %vm232, %v211, 0
        %v294 = vsel %vm232, %v212, 0
        %v297 = vsel %vm232, %v213, 0
        %v300 = vsel %vm232, %v214, 0
        %v303 = vsel %vm232, %v215, 0
        %v306 = vsel %vm232, %v216, 0
        %v309 = vsel %vm232, %v217, 0
        %v312 = vsel %vm232, %v218, 0
        %v315 = vsel %vm232, %v219, 0
        %v318 = vsel %vm232, %v220, 0
        %v321 = vsel %vm232, %v221, 0
        %v324 = vsel %vm232, %v222, 0
        %v327 = vsel %vm232, %v223, 0
        %vm329 = vcmask 1043456
        %v331 = vsel %vm329, %v224, 0
        %333 = vmatprep.subr.mxu0 0.0
        %334 = vmatpush1.msra.mxu0 %v331
        %335 = vmatprep.subr.mxu0 0.0
        %336 = vmatpush1.msra.mxu0 0.0
        %337 = vmatprep.subr.mxu0 0.0
        %338 = vmatpush1.msra.mxu0 0.0
        %339 = vmatprep.subr.mxu0 0.0
        %340 = vmatpush1.msra.mxu0 0.0
        %341 = vmatprep.subr.mxu0 0.0
        %342 = vmatpush1.msra.mxu0 0.0
        %343 = vmatprep.subr.mxu0 0.0
        %344 = vmatpush1.msra.mxu0 0.0
        %345 = vmatprep.subr.mxu0 0.0
        %346 = vmatpush1.msra.mxu0 0.0
        %347 = vmatprep.subr.mxu0 0.0
        %348 = vmatpush1.msra.mxu0 0.0
        %349 = vmatprep.subr.mxu0 0.0
        %350 = vmatpush1.msra.mxu0 0.0
        %351 = vmatprep.subr.mxu0 0.0
        %352 = vmatpush1.msra.mxu0 0.0
        %353 = vmatprep.subr.mxu0 0.0
        %354 = vmatpush1.msra.mxu0 0.0
        %355 = vmatprep.subr.mxu0 0.0
        %356 = vmatpush1.msra.mxu0 0.0
        %357 = vmatprep.subr.mxu0 0.0
        %358 = vmatpush1.msra.mxu0 0.0
        %359 = vmatprep.subr.mxu0 0.0
        %360 = vmatpush1.msra.mxu0 0.0
        %361 = vmatprep.subr.mxu0 0.0
        %362 = vmatpush1.msra.mxu0 0.0
        %363 = vmatprep.subr.mxu0 0.0
        %364 = vmatpush1.msra.mxu0 0.0
        %365 = vmatprep.subr.mxu0 0.0
        %366 = vmatpush1.msra.mxu0 0.0
        %367 = vmatprep.subr.mxu0 0.0
        %368 = vmatpush1.msra.mxu0 0.0
        %369 = vmatprep.subr.mxu0 0.0
        %370 = vmatpush1.msra.mxu0 0.0
        %371 = vmatprep.subr.mxu0 0.0
        %372 = vmatpush1.msra.mxu0 0.0
        %373 = vmatprep.subr.mxu0 0.0
        %374 = vmatpush1.msra.mxu0 0.0
        %375 = vmatprep.subr.mxu0 0.0
        %376 = vmatpush1.msra.mxu0 0.0
        %377 = vmatprep.subr.mxu0 0.0
        %378 = vmatpush1.msra.mxu0 0.0
        %379 = vmatprep.subr.mxu0 0.0
        %380 = vmatpush1.msra.mxu0 0.0
        %381 = vmatprep.subr.mxu0 0.0
        %382 = vmatpush1.msra.mxu0 0.0
        %383 = vmatprep.subr.mxu0 0.0
        %384 = vmatpush1.msra.mxu0 0.0
        %385 = vmatprep.subr.mxu0 0.0
        %386 = vmatpush1.msra.mxu0 0.0
        %387 = vmatprep.subr.mxu0 0.0
        %388 = vmatpush1.msra.mxu0 0.0
        %389 = vmatprep.subr.mxu0 0.0
        %390 = vmatpush1.msra.mxu0 0.0
        %391 = vmatprep.subr.mxu0 0.0
        %392 = vmatpush1.msra.mxu0 0.0
        %393 = vmatprep.subr.mxu0 0.0
        %394 = vmatpush1.msra.mxu0 0.0
        %395 = vmatprep.subr.mxu0 0.0
        %396 = vmatpush1.msra.mxu0 0.0
        %397 = vmatprep.mubr.f32.mxu0 0.0
        %398 = vmatmul.mubr.f32.gmra.mrb[0].mxu0 %v234
        %v399 = vpop.f32.mrb[0].mxu0
        %v400 = vadd.f32 %v230, %v399
        %v401 = vpop.f32.mrb[0].mxu0
        %402 = vmatprep.mubr.f32.mxu0 0.0
        %403 = vmatmul.mubr.f32.gmra.mrb[0].mxu0 %v237
        %v404 = vpop.f32.mrb[0].mxu0
        %v405 = vadd.f32 %v230, %v404
        %v406 = vpop.f32.mrb[0].mxu0
        %407 = vmatprep.mubr.f32.mxu0 0.0
        %408 = vmatmul.mubr.f32.gmra.mrb[0].mxu0 %v240
        %v409 = vpop.f32.mrb[0].mxu0
        %v410 = vadd.f32 %v230, %v409
        %v411 = vpop.f32.mrb[0].mxu0
        %412 = vmatprep.mubr.f32.mxu0 0.0
        %413 = vmatmul.mubr.f32.gmra.mrb[0].mxu0 %v243
        %v414 = vpop.f32.mrb[0].mxu0
        %v415 = vadd.f32 %v230, %v414
        %v416 = vpop.f32.mrb[0].mxu0
        %417 = vmatprep.mubr.f32.mxu0 0.0
        %418 = vmatmul.mubr.f32.gmra.mrb[0].mxu0 %v246
        %v419 = vpop.f32.mrb[0].mxu0
        %v420 = vadd.f32 %v230, %v419
        %v421 = vpop.f32.mrb[0].mxu0
        %422 = vmatprep.mubr.f32.mxu0 0.0
        %423 = vmatmul.mubr.f32.gmra.mrb[0].mxu0 %v249
        %v424 = vpop.f32.mrb[0].mxu0
        %v425 = vadd.f32 %v230, %v424
        %v426 = vpop.f32.mrb[0].mxu0
        %427 = vmatprep.mubr.f32.mxu0 0.0
        %428 = vmatmul.mubr.f32.gmra.mrb[0].mxu0 %v252
        %v429 = vpop.f32.mrb[0].mxu0
        %v430 = vadd.f32 %v230, %v429
        %v431 = vpop.f32.mrb[0].mxu0
        %432 = vmatprep.mubr.f32.mxu0 0.0
        %433 = vmatmul.mubr.f32.gmra.mrb[0].mxu0 %v255
        %v434 = vpop.f32.mrb[0].mxu0
        %v435 = vadd.f32 %v230, %v434
        %v436 = vpop.f32.mrb[0].mxu0
        %437 = vmatprep.mubr.f32.mxu0 0.0
        %438 = vmatmul.mubr.f32.gmra.mrb[0].mxu0 %v258
        %v439 = vpop.f32.mrb[0].mxu0
        %v440 = vadd.f32 %v230, %v439
        %v441 = vpop.f32.mrb[0].mxu0
        %442 = vmatprep.mubr.f32.mxu0 0.0
        %443 = vmatmul.mubr.f32.gmra.mrb[0].mxu0 %v261
        %v444 = vpop.f32.mrb[0].mxu0
        %v445 = vadd.f32 %v230, %v444
        %v446 = vpop.f32.mrb[0].mxu0
        %447 = vmatprep.mubr.f32.mxu0 0.0
        %448 = vmatmul.mubr.f32.gmra.mrb[0].mxu0 %v264
        %v449 = vpop.f32.mrb[0].mxu0
        %v450 = vadd.f32 %v230, %v449
        %v451 = vpop.f32.mrb[0].mxu0
        %452 = vmatprep.mubr.f32.mxu0 0.0
        %453 = vmatmul.mubr.f32.gmra.mrb[0].mxu0 %v267
        %v454 = vpop.f32.mrb[0].mxu0
        %v455 = vadd.f32 %v230, %v454
        %v456 = vpop.f32.mrb[0].mxu0
        %457 = vmatprep.mubr.f32.mxu0 0.0
        %458 = vmatmul.mubr.f32.gmra.mrb[0].mxu0 %v270
        %v459 = vpop.f32.mrb[0].mxu0
        %v460 = vadd.f32 %v230, %v459
        %v461 = vpop.f32.mrb[0].mxu0
        %462 = vmatprep.mubr.f32.mxu0 0.0
        %463 = vmatmul.mubr.f32.gmra.mrb[0].mxu0 %v273
        %v464 = vpop.f32.mrb[0].mxu0
        %v465 = vadd.f32 %v230, %v464
        %v466 = vpop.f32.mrb[0].mxu0
        %467 = vmatprep.mubr.f32.mxu0 0.0
        %468 = vmatmul.mubr.f32.gmra.mrb[0].mxu0 %v276
        %v469 = vpop.f32.mrb[0].mxu0
        %v470 = vadd.f32 %v230, %v469
        %v471 = vpop.f32.mrb[0].mxu0
        %472 = vmatprep.mubr.f32.mxu0 0.0
        %473 = vmatmul.mubr.f32.gmra.mrb[0].mxu0 %v279
        %v474 = vpop.f32.mrb[0].mxu0
        %v475 = vadd.f32 %v230, %v474
        %v476 = vpop.f32.mrb[0].mxu0
        %477 = vmatprep.mubr.f32.mxu0 0.0
        %478 = vmatmul.mubr.f32.gmra.mrb[0].mxu0 %v282
        %v479 = vpop.f32.mrb[0].mxu0
        %v480 = vadd.f32 %v230, %v479
        %v481 = vpop.f32.mrb[0].mxu0
        %482 = vmatprep.mubr.f32.mxu0 0.0
        %483 = vmatmul.mubr.f32.gmra.mrb[0].mxu0 %v285
        %v484 = vpop.f32.mrb[0].mxu0
        %v485 = vadd.f32 %v230, %v484
        %v486 = vpop.f32.mrb[0].mxu0
        %487 = vmatprep.mubr.f32.mxu0 0.0
        %488 = vmatmul.mubr.f32.gmra.mrb[0].mxu0 %v288
        %v489 = vpop.f32.mrb[0].mxu0
        %v490 = vadd.f32 %v230, %v489
        %v491 = vpop.f32.mrb[0].mxu0
        %492 = vmatprep.mubr.f32.mxu0 0.0
        %493 = vmatmul.mubr.f32.gmra.mrb[0].mxu0 %v291
        %v494 = vpop.f32.mrb[0].mxu0
        %v495 = vadd.f32 %v230, %v494
        %v496 = vpop.f32.mrb[0].mxu0
        %497 = vmatprep.mubr.f32.mxu0 0.0
        %498 = vmatmul.mubr.f32.gmra.mrb[0].mxu0 %v294
        %v499 = vpop.f32.mrb[0].mxu0
        %v500 = vadd.f32 %v230, %v499
        %v501 = vpop.f32.mrb[0].mxu0
        %502 = vmatprep.mubr.f32.mxu0 0.0
        %503 = vmatmul.mubr.f32.gmra.mrb[0].mxu0 %v297
        %v504 = vpop.f32.mrb[0].mxu0
        %v505 = vadd.f32 %v230, %v504
        %v506 = vpop.f32.mrb[0].mxu0
        %507 = vmatprep.mubr.f32.mxu0 0.0
        %508 = vmatmul.mubr.f32.gmra.mrb[0].mxu0 %v300
        %v509 = vpop.f32.mrb[0].mxu0
        %v510 = vadd.f32 %v230, %v509
        %v511 = vpop.f32.mrb[0].mxu0
        %512 = vmatprep.mubr.f32.mxu0 0.0
        %513 = vmatmul.mubr.f32.gmra.mrb[0].mxu0 %v303
        %v514 = vpop.f32.mrb[0].mxu0
        %v515 = vadd.f32 %v230, %v514
        %v516 = vpop.f32.mrb[0].mxu0
        %517 = vmatprep.mubr.f32.mxu0 0.0
        %518 = vmatmul.mubr.f32.gmra.mrb[0].mxu0 %v306
        %v519 = vpop.f32.mrb[0].mxu0
        %v520 = vadd.f32 %v230, %v519
        %v521 = vpop.f32.mrb[0].mxu0
        %522 = vmatprep.mubr.f32.mxu0 0.0
        %523 = vmatmul.mubr.f32.gmra.mrb[0].mxu0 %v309
        %v524 = vpop.f32.mrb[0].mxu0
        %v525 = vadd.f32 %v230, %v524
        %v526 = vpop.f32.mrb[0].mxu0
        %527 = vmatprep.mubr.f32.mxu0 0.0
        %528 = vmatmul.mubr.f32.gmra.mrb[0].mxu0 %v312
        %v529 = vpop.f32.mrb[0].mxu0
        %v530 = vadd.f32 %v230, %v529
        %v531 = vpop.f32.mrb[0].mxu0
        %532 = vmatprep.mubr.f32.mxu0 0.0
        %533 = vmatmul.mubr.f32.gmra.mrb[0].mxu0 %v315
        %v534 = vpop.f32.mrb[0].mxu0
        %v535 = vadd.f32 %v230, %v534
        %v536 = vpop.f32.mrb[0].mxu0
        %537 = vmatprep.mubr.f32.mxu0 0.0
        %538 = vmatmul.mubr.f32.gmra.mrb[0].mxu0 %v318
        %v539 = vpop.f32.mrb[0].mxu0
        %v540 = vadd.f32 %v230, %v539
        %v541 = vpop.f32.mrb[0].mxu0
        %542 = vmatprep.mubr.f32.mxu0 0.0
        %543 = vmatmul.mubr.f32.gmra.mrb[0].mxu0 %v321
        %v544 = vpop.f32.mrb[0].mxu0
        %v545 = vadd.f32 %v230, %v544
        %v546 = vpop.f32.mrb[0].mxu0
        %547 = vmatprep.mubr.f32.mxu0 0.0
        %548 = vmatmul.mubr.f32.gmra.mrb[0].mxu0 %v324
        %v549 = vpop.f32.mrb[0].mxu0
        %v550 = vadd.f32 %v230, %v549
        %v551 = vpop.f32.mrb[0].mxu0
        %552 = vmatprep.mubr.f32.mxu0 0.0
        %553 = vmatmul.mubr.f32.gmra.mrb[0].mxu0 %v327
        %v554 = vpop.f32.mrb[0].mxu0
        %v555 = vadd.f32 %v230, %v554
        %v556 = vpop.f32.mrb[0].mxu0
        %557 = vdwg.mxu0
        %vm558 = vcmask 15360
        %559 = vst.msk [vmem:[%s172] sm:$0xff] %vm558, %v400
        %560 = vst.msk [vmem:[%s172 + $0x8] sm:$0xff] %vm558, %v405
        %561 = vst.msk [vmem:[%s172 + $0x10] sm:$0xff] %vm558, %v410
        %562 = vst.msk [vmem:[%s172 + $0x18] sm:$0xff] %vm558, %v415
        %563 = vst.msk [vmem:[%s172 + $0x20] sm:$0xff] %vm558, %v420
        %564 = vst.msk [vmem:[%s172 + $0x28] sm:$0xff] %vm558, %v425
        %565 = vst.msk [vmem:[%s172 + $0x30] sm:$0xff] %vm558, %v430
        %566 = vst.msk [vmem:[%s172 + $0x38] sm:$0xff] %vm558, %v435
        %567 = vst.msk [vmem:[%s172 + $0x40] sm:$0xff] %vm558, %v440
        %568 = vst.msk [vmem:[%s172 + $0x48] sm:$0xff] %vm558, %v445
        %569 = vst.msk [vmem:[%s172 + $0x50] sm:$0xff] %vm558, %v450
        %570 = vst.msk [vmem:[%s172 + $0x58] sm:$0xff] %vm558, %v455
        %571 = vst.msk [vmem:[%s172 + $0x60] sm:$0xff] %vm558, %v460
        %572 = vst.msk [vmem:[%s172 + $0x68] sm:$0xff] %vm558, %v465
        %573 = vst.msk [vmem:[%s172 + $0x70] sm:$0xff] %vm558, %v470
        %574 = vst.msk [vmem:[%s172 + $0x78] sm:$0xff] %vm558, %v475
        %575 = vst.msk [vmem:[%s172 + $0x80] sm:$0xff] %vm558, %v480
        %576 = vst.msk [vmem:[%s172 + $0x88] sm:$0xff] %vm558, %v485
        %577 = vst.msk [vmem:[%s172 + $0x90] sm:$0xff] %vm558, %v490
        %578 = vst.msk [vmem:[%s172 + $0x98] sm:$0xff] %vm558, %v495
        %579 = vst.msk [vmem:[%s172 + $0xa0] sm:$0xff] %vm558, %v500
        %580 = vst.msk [vmem:[%s172 + $0xa8] sm:$0xff] %vm558, %v505
        %581 = vst.msk [vmem:[%s172 + $0xb0] sm:$0xff] %vm558, %v510
        %582 = vst.msk [vmem:[%s172 + $0xb8] sm:$0xff] %vm558, %v515
        %583 = vst.msk [vmem:[%s172 + $0xc0] sm:$0xff] %vm558, %v520
        %584 = vst.msk [vmem:[%s172 + $0xc8] sm:$0xff] %vm558, %v525
        %585 = vst.msk [vmem:[%s172 + $0xd0] sm:$0xff] %vm558, %v530
        %586 = vst.msk [vmem:[%s172 + $0xd8] sm:$0xff] %vm558, %v535
        %587 = vst.msk [vmem:[%s172 + $0xe0] sm:$0xff] %vm558, %v540
        %588 = vst.msk [vmem:[%s172 + $0xe8] sm:$0xff] %vm558, %v545
        %589 = vst.msk [vmem:[%s172 + $0xf0] sm:$0xff] %vm558, %v550
        %590 = vst.msk [vmem:[%s172 + $0xf8] sm:$0xff] %vm558, %v555
        %s591 = sand.u32 %s90, 1
        %s592 = sand.u32 %s90, 1
        %s593 = smul.addr %s592, 256
        %s594 = scalar_lea.vmem [#allocation2], %s593
        // Predicated region
        $region33: #{tpu_custom_call.1} parent=31 // pred_check
          %p595 = pneg %p100
        $region34: #{tpu_custom_call.1} parent=31 // pred_check_branch
          %597 = sbr.rel (%p595) target = $region36
        $region35: #{tpu_custom_call.1} parent=31 // pred_region
          %s598 = smul.u32 32, %s14
          %s599 = ssub.s32 125, %s598
          %p600 = scmp.lt.s32.totalorder %s599, 32
          %s601 = scalar_select %p600, %s599, 32
          %s602 = smul.u32 128, %s601
          %p603 = scmp.ne.s32.totalorder 0, %s602
          %s604 = smul.addr %s598, 8
          %s605 = scalar_lea.vmem %s3, %s604
          // Predicated region
          $region37: #{tpu_custom_call.1} parent=35 // pred_check
            %p606 = pneg %p603
          $region38: #{tpu_custom_call.1} parent=35 // pred_check_branch
            %608 = sbr.rel (%p606) target = $region40
          $region39: #{tpu_custom_call.1} parent=35 // pred_region
            // Predicated region
            $region41: #{tpu_custom_call.1} parent=39 // pred_check
              _
            $region42: #{tpu_custom_call.1} parent=39 // pred_check_branch
              %610 = sbr.rel (0) target = $region44
            $region43: #{tpu_custom_call.1} parent=39 // pred_region
              // Predicated region
              $region63: #{tpu_custom_call.1} parent=43 // pred_check
                _
              $region64: #{tpu_custom_call.1} parent=43 // pred_check_branch
                %721 = sbr.rel (0) target = $region66
              $region65: #{tpu_custom_call.1} parent=43 // pred_region
                %s722 = sshrl.u32 %s601, 5
                // While loop
                $region67: #{tpu_custom_call.1} parent=65 // loop_pre_header
                  _
                $region68: #{tpu_custom_call.1} parent=65 // loop_header
                  %s724 = sphi 0, %s726
                  %p725 = scmp.ge.s32.totalorder %s724, %s722
                  %s729 = sphi 0, %s798
                  %s730 = sphi %s594, %s801
                  %s731 = sphi %s605, %s802
                $region69: #{tpu_custom_call.1} parent=65 // loop_header_branch
                  %728 = sbr.rel (%p725) target = $region73
                $region70: #{tpu_custom_call.1} parent=65 // loop_body
                  %v732 = vld [vmem:[%s730] sm:$0xff]
                  %733 = vst [vmem:[%s731] sm:$0xff] %v732
                  %v734 = vld [vmem:[%s730 + $0x8] sm:$0xff]
                  %735 = vst [vmem:[%s731 + $0x8] sm:$0xff] %v734
                  %v736 = vld [vmem:[%s730 + $0x10] sm:$0xff]
                  %737 = vst [vmem:[%s731 + $0x10] sm:$0xff] %v736
                  %v738 = vld [vmem:[%s730 + $0x18] sm:$0xff]
                  %739 = vst [vmem:[%s731 + $0x18] sm:$0xff] %v738
                  %v740 = vld [vmem:[%s730 + $0x20] sm:$0xff]
                  %741 = vst [vmem:[%s731 + $0x20] sm:$0xff] %v740
                  %v742 = vld [vmem:[%s730 + $0x28] sm:$0xff]
                  %743 = vst [vmem:[%s731 + $0x28] sm:$0xff] %v742
                  %v744 = vld [vmem:[%s730 + $0x30] sm:$0xff]
                  %745 = vst [vmem:[%s731 + $0x30] sm:$0xff] %v744
                  %v746 = vld [vmem:[%s730 + $0x38] sm:$0xff]
                  %747 = vst [vmem:[%s731 + $0x38] sm:$0xff] %v746
                  %v748 = vld [vmem:[%s730 + $0x40] sm:$0xff]
                  %749 = vst [vmem:[%s731 + $0x40] sm:$0xff] %v748
                  %v750 = vld [vmem:[%s730 + $0x48] sm:$0xff]
                  %751 = vst [vmem:[%s731 + $0x48] sm:$0xff] %v750
                  %v752 = vld [vmem:[%s730 + $0x50] sm:$0xff]
                  %753 = vst [vmem:[%s731 + $0x50] sm:$0xff] %v752
                  %v754 = vld [vmem:[%s730 + $0x58] sm:$0xff]
                  %755 = vst [vmem:[%s731 + $0x58] sm:$0xff] %v754
                  %v756 = vld [vmem:[%s730 + $0x60] sm:$0xff]
                  %757 = vst [vmem:[%s731 + $0x60] sm:$0xff] %v756
                  %v758 = vld [vmem:[%s730 + $0x68] sm:$0xff]
                  %759 = vst [vmem:[%s731 + $0x68] sm:$0xff] %v758
                  %v760 = vld [vmem:[%s730 + $0x70] sm:$0xff]
                  %761 = vst [vmem:[%s731 + $0x70] sm:$0xff] %v760
                  %v762 = vld [vmem:[%s730 + $0x78] sm:$0xff]
                  %763 = vst [vmem:[%s731 + $0x78] sm:$0xff] %v762
                  %v764 = vld [vmem:[%s730 + $0x80] sm:$0xff]
                  %765 = vst [vmem:[%s731 + $0x80] sm:$0xff] %v764
                  %v766 = vld [vmem:[%s730 + $0x88] sm:$0xff]
                  %767 = vst [vmem:[%s731 + $0x88] sm:$0xff] %v766
                  %v768 = vld [vmem:[%s730 + $0x90] sm:$0xff]
                  %769 = vst [vmem:[%s731 + $0x90] sm:$0xff] %v768
                  %v770 = vld [vmem:[%s730 + $0x98] sm:$0xff]
                  %771 = vst [vmem:[%s731 + $0x98] sm:$0xff] %v770
                  %v772 = vld [vmem:[%s730 + $0xa0] sm:$0xff]
                  %773 = vst [vmem:[%s731 + $0xa0] sm:$0xff] %v772
                  %v774 = vld [vmem:[%s730 + $0xa8] sm:$0xff]
                  %775 = vst [vmem:[%s731 + $0xa8] sm:$0xff] %v774
                  %v776 = vld [vmem:[%s730 + $0xb0] sm:$0xff]
                  %777 = vst [vmem:[%s731 + $0xb0] sm:$0xff] %v776
                  %v778 = vld [vmem:[%s730 + $0xb8] sm:$0xff]
                  %779 = vst [vmem:[%s731 + $0xb8] sm:$0xff] %v778
                  %v780 = vld [vmem:[%s730 + $0xc0] sm:$0xff]
                  %781 = vst [vmem:[%s731 + $0xc0] sm:$0xff] %v780
                  %v782 = vld [vmem:[%s730 + $0xc8] sm:$0xff]
                  %783 = vst [vmem:[%s731 + $0xc8] sm:$0xff] %v782
                  %v784 = vld [vmem:[%s730 + $0xd0] sm:$0xff]
                  %785 = vst [vmem:[%s731 + $0xd0] sm:$0xff] %v784
                  %v786 = vld [vmem:[%s730 + $0xd8] sm:$0xff]
                  %787 = vst [vmem:[%s731 + $0xd8] sm:$0xff] %v786
                  %v788 = vld [vmem:[%s730 + $0xe0] sm:$0xff]
                  %789 = vst [vmem:[%s731 + $0xe0] sm:$0xff] %v788
                  %v790 = vld [vmem:[%s730 + $0xe8] sm:$0xff]
                  %791 = vst [vmem:[%s731 + $0xe8] sm:$0xff] %v790
                  %v792 = vld [vmem:[%s730 + $0xf0] sm:$0xff]
                  %793 = vst [vmem:[%s731 + $0xf0] sm:$0xff] %v792
                  %v794 = vld [vmem:[%s730 + $0xf8] sm:$0xff]
                  %795 = vst [vmem:[%s731 + $0xf8] sm:$0xff] %v794
                  %s796 = sadd.s32 1, %s729
                  %p797 = scmp.ge.s32.totalorder %s796, %s722
                  %s798 = scalar_select %p797, 0, %s796
                  %s799 = smul.u32 %s798, 256
                  %s800 = smul.u32 %s798, 256
                  %s801 = scalar_lea.vmem %s594, %s799 [#allocation2]
                  %s802 = scalar_lea.vmem %s605, %s800
                $region71: #{tpu_custom_call.1} parent=65 // loop_footer
                  %s726 = sadd.s32 %s724, 1
                $region72: #{tpu_custom_call.1} parent=65 // loop_footer_branch
                  %723 = sbr.rel target = $region68
                $region73: #{tpu_custom_call.1} parent=65 // loop_exit
                  _
                %s803 = sshrl.u32 %s601, 5
                %s804 = sand.u32 %s601, 31
                %s805 = smul.u32 %s803, 32
                %s806 = smul.u32 8, %s805
                %s807 = scalar_lea.vmem %s594, %s806 [#allocation2]
                %s808 = smul.u32 8, %s805
                %s809 = scalar_lea.vmem %s605, %s808
                // While loop
                $region74: #{tpu_custom_call.1} parent=65 // loop_pre_header
                  _
                $region75: #{tpu_custom_call.1} parent=65 // loop_header
                  %s811 = sphi 0, %s813
                  %p812 = scmp.ge.s32.totalorder %s811, %s804
                  %s816 = sphi 0, %s823
                  %s817 = sphi %s807, %s826
                  %s818 = sphi %s809, %s827
                $region76: #{tpu_custom_call.1} parent=65 // loop_header_branch
                  %815 = sbr.rel (%p812) target = $region80
                $region77: #{tpu_custom_call.1} parent=65 // loop_body
                  %v819 = vld [vmem:[%s817] sm:$0xff]
                  %820 = vst [vmem:[%s818] sm:$0xff] %v819
                  %s821 = sadd.s32 1, %s816
                  %p822 = scmp.ge.s32.totalorder %s821, %s804
                  %s823 = scalar_select %p822, 0, %s821
                  %s824 = smul.u32 %s823, 8
                  %s825 = smul.u32 %s823, 8
                  %s826 = scalar_lea.vmem %s807, %s824 [#allocation2]
                  %s827 = scalar_lea.vmem %s809, %s825
                $region78: #{tpu_custom_call.1} parent=65 // loop_footer
                  %s813 = sadd.s32 %s811, 1
                $region79: #{tpu_custom_call.1} parent=65 // loop_footer_branch
                  %810 = sbr.rel target = $region75
                $region80: #{tpu_custom_call.1} parent=65 // loop_exit
                  _
              $region66: #{tpu_custom_call.1} parent=43 // pred_fallthru
                _
              // Predicated region
              $region81: #{tpu_custom_call.1} parent=43 // pred_check
                _
              $region82: #{tpu_custom_call.1} parent=43 // pred_check_branch
                %829 = sbr.rel target = $region84
              $region83: #{tpu_custom_call.1} parent=43 // pred_region
                _
              $region84: #{tpu_custom_call.1} parent=43 // pred_fallthru
                _
            $region44: #{tpu_custom_call.1} parent=39 // pred_fallthru
              _
            // Predicated region
            $region45: #{tpu_custom_call.1} parent=39 // pred_check
              _
            $region46: #{tpu_custom_call.1} parent=39 // pred_check_branch
              %612 = sbr.rel target = $region48
            $region47: #{tpu_custom_call.1} parent=39 // pred_region
              %s614 = sshrl.u32 %s601, 5
              // While loop
              $region49: #{tpu_custom_call.1} parent=47 // loop_pre_header
                _
              $region50: #{tpu_custom_call.1} parent=47 // loop_header
                %s616 = sphi 0, %s618
                %p617 = scmp.ge.s32.totalorder %s616, %s614
                %s621 = sphi 0, %s690
                %s622 = sphi %s594, %s693
                %s623 = sphi %s605, %s694
              $region51: #{tpu_custom_call.1} parent=47 // loop_header_branch
                %620 = sbr.rel (%p617) target = $region55
              $region52: #{tpu_custom_call.1} parent=47 // loop_body
                %v624 = vld [vmem:[%s622] sm:$0xff]
                %625 = vst [vmem:[%s623] sm:$0xff] %v624
                %v626 = vld [vmem:[%s622 + $0x8] sm:$0xff]
                %627 = vst [vmem:[%s623 + $0x8] sm:$0xff] %v626
                %v628 = vld [vmem:[%s622 + $0x10] sm:$0xff]
                %629 = vst [vmem:[%s623 + $0x10] sm:$0xff] %v628
                %v630 = vld [vmem:[%s622 + $0x18] sm:$0xff]
                %631 = vst [vmem:[%s623 + $0x18] sm:$0xff] %v630
                %v632 = vld [vmem:[%s622 + $0x20] sm:$0xff]
                %633 = vst [vmem:[%s623 + $0x20] sm:$0xff] %v632
                %v634 = vld [vmem:[%s622 + $0x28] sm:$0xff]
                %635 = vst [vmem:[%s623 + $0x28] sm:$0xff] %v634
                %v636 = vld [vmem:[%s622 + $0x30] sm:$0xff]
                %637 = vst [vmem:[%s623 + $0x30] sm:$0xff] %v636
                %v638 = vld [vmem:[%s622 + $0x38] sm:$0xff]
                %639 = vst [vmem:[%s623 + $0x38] sm:$0xff] %v638
                %v640 = vld [vmem:[%s622 + $0x40] sm:$0xff]
                %641 = vst [vmem:[%s623 + $0x40] sm:$0xff] %v640
                %v642 = vld [vmem:[%s622 + $0x48] sm:$0xff]
                %643 = vst [vmem:[%s623 + $0x48] sm:$0xff] %v642
                %v644 = vld [vmem:[%s622 + $0x50] sm:$0xff]
                %645 = vst [vmem:[%s623 + $0x50] sm:$0xff] %v644
                %v646 = vld [vmem:[%s622 + $0x58] sm:$0xff]
                %647 = vst [vmem:[%s623 + $0x58] sm:$0xff] %v646
                %v648 = vld [vmem:[%s622 + $0x60] sm:$0xff]
                %649 = vst [vmem:[%s623 + $0x60] sm:$0xff] %v648
                %v650 = vld [vmem:[%s622 + $0x68] sm:$0xff]
                %651 = vst [vmem:[%s623 + $0x68] sm:$0xff] %v650
                %v652 = vld [vmem:[%s622 + $0x70] sm:$0xff]
                %653 = vst [vmem:[%s623 + $0x70] sm:$0xff] %v652
                %v654 = vld [vmem:[%s622 + $0x78] sm:$0xff]
                %655 = vst [vmem:[%s623 + $0x78] sm:$0xff] %v654
                %v656 = vld [vmem:[%s622 + $0x80] sm:$0xff]
                %657 = vst [vmem:[%s623 + $0x80] sm:$0xff] %v656
                %v658 = vld [vmem:[%s622 + $0x88] sm:$0xff]
                %659 = vst [vmem:[%s623 + $0x88] sm:$0xff] %v658
                %v660 = vld [vmem:[%s622 + $0x90] sm:$0xff]
                %661 = vst [vmem:[%s623 + $0x90] sm:$0xff] %v660
                %v662 = vld [vmem:[%s622 + $0x98] sm:$0xff]
                %663 = vst [vmem:[%s623 + $0x98] sm:$0xff] %v662
                %v664 = vld [vmem:[%s622 + $0xa0] sm:$0xff]
                %665 = vst [vmem:[%s623 + $0xa0] sm:$0xff] %v664
                %v666 = vld [vmem:[%s622 + $0xa8] sm:$0xff]
                %667 = vst [vmem:[%s623 + $0xa8] sm:$0xff] %v666
                %v668 = vld [vmem:[%s622 + $0xb0] sm:$0xff]
                %669 = vst [vmem:[%s623 + $0xb0] sm:$0xff] %v668
                %v670 = vld [vmem:[%s622 + $0xb8] sm:$0xff]
                %671 = vst [vmem:[%s623 + $0xb8] sm:$0xff] %v670
                %v672 = vld [vmem:[%s622 + $0xc0] sm:$0xff]
                %673 = vst [vmem:[%s623 + $0xc0] sm:$0xff] %v672
                %v674 = vld [vmem:[%s622 + $0xc8] sm:$0xff]
                %675 = vst [vmem:[%s623 + $0xc8] sm:$0xff] %v674
                %v676 = vld [vmem:[%s622 + $0xd0] sm:$0xff]
                %677 = vst [vmem:[%s623 + $0xd0] sm:$0xff] %v676
                %v678 = vld [vmem:[%s622 + $0xd8] sm:$0xff]
                %679 = vst [vmem:[%s623 + $0xd8] sm:$0xff] %v678
                %v680 = vld [vmem:[%s622 + $0xe0] sm:$0xff]
                %681 = vst [vmem:[%s623 + $0xe0] sm:$0xff] %v680
                %v682 = vld [vmem:[%s622 + $0xe8] sm:$0xff]
                %683 = vst [vmem:[%s623 + $0xe8] sm:$0xff] %v682
                %v684 = vld [vmem:[%s622 + $0xf0] sm:$0xff]
                %685 = vst [vmem:[%s623 + $0xf0] sm:$0xff] %v684
                %v686 = vld [vmem:[%s622 + $0xf8] sm:$0xff]
                %687 = vst [vmem:[%s623 + $0xf8] sm:$0xff] %v686
                %s688 = sadd.s32 1, %s621
                %p689 = scmp.ge.s32.totalorder %s688, %s614
                %s690 = scalar_select %p689, 0, %s688
                %s691 = smul.u32 %s690, 256
                %s692 = smul.u32 %s690, 256
                %s693 = scalar_lea.vmem %s594, %s691 [#allocation2]
                %s694 = scalar_lea.vmem %s605, %s692
              $region53: #{tpu_custom_call.1} parent=47 // loop_footer
                %s618 = sadd.s32 %s616, 1
              $region54: #{tpu_custom_call.1} parent=47 // loop_footer_branch
                %615 = sbr.rel target = $region50
              $region55: #{tpu_custom_call.1} parent=47 // loop_exit
                _
              %s695 = sshrl.u32 %s601, 5
              %s696 = sand.u32 %s601, 31
              %s697 = smul.u32 %s695, 32
              %s698 = smul.u32 8, %s697
              %s699 = scalar_lea.vmem %s594, %s698 [#allocation2]
              %s700 = smul.u32 8, %s697
              %s701 = scalar_lea.vmem %s605, %s700
              // While loop
              $region56: #{tpu_custom_call.1} parent=47 // loop_pre_header
                _
              $region57: #{tpu_custom_call.1} parent=47 // loop_header
                %s703 = sphi 0, %s705
                %p704 = scmp.ge.s32.totalorder %s703, %s696
                %s708 = sphi 0, %s715
                %s709 = sphi %s699, %s718
                %s710 = sphi %s701, %s719
              $region58: #{tpu_custom_call.1} parent=47 // loop_header_branch
                %707 = sbr.rel (%p704) target = $region62
              $region59: #{tpu_custom_call.1} parent=47 // loop_body
                %v711 = vld [vmem:[%s709] sm:$0xff]
                %712 = vst [vmem:[%s710] sm:$0xff] %v711
                %s713 = sadd.s32 1, %s708
                %p714 = scmp.ge.s32.totalorder %s713, %s696
                %s715 = scalar_select %p714, 0, %s713
                %s716 = smul.u32 %s715, 8
                %s717 = smul.u32 %s715, 8
                %s718 = scalar_lea.vmem %s699, %s716 [#allocation2]
                %s719 = scalar_lea.vmem %s701, %s717
              $region60: #{tpu_custom_call.1} parent=47 // loop_footer
                %s705 = sadd.s32 %s703, 1
              $region61: #{tpu_custom_call.1} parent=47 // loop_footer_branch
                %702 = sbr.rel target = $region57
              $region62: #{tpu_custom_call.1} parent=47 // loop_exit
                _
            $region48: #{tpu_custom_call.1} parent=39 // pred_fallthru
              _
          $region40: #{tpu_custom_call.1} parent=35 // pred_fallthru
            _
          %830 = vnop
        $region36: #{tpu_custom_call.1} parent=31 // pred_fallthru
          _
      $region32: #{tpu_custom_call.1} parent=5 // pred_fallthru
        _
      %p831 = scmp.le.s32.totalorder 2, %s9
      // Predicated region
      $region85: #{tpu_custom_call.1} parent=5 // pred_check
        %p832 = pneg %p831
      $region86: #{tpu_custom_call.1} parent=5 // pred_check_branch
        %834 = sbr.rel (%p832) target = $region88
      $region87: #{tpu_custom_call.1} parent=5 // pred_region
        %s835 = ssub.s32 %s9, 2
        // Predicated region
        $region89: #{tpu_custom_call.1} parent=87 // pred_check
          %p836 = pneg %p106
        $region90: #{tpu_custom_call.1} parent=87 // pred_check_branch
          %838 = sbr.rel (%p836) target = $region92
        $region91: #{tpu_custom_call.1} parent=87 // pred_region
          %s839 = sand.u32 %s91, 1
          %s840 = sand.u32 %s91, 1
          %s841 = smul.addr %s840, 256
          %s842 = scalar_lea.vmem [#allocation2], %s841
        $region92: #{tpu_custom_call.1} parent=87 // pred_fallthru
          _
      $region88: #{tpu_custom_call.1} parent=5 // pred_fallthru
        _
    $region6: #{tpu_custom_call.1} parent=1 // loop_footer
      %s13 = sadd.s32 1, %s9
    $region7: #{tpu_custom_call.1} parent=1 // loop_footer_branch
      %8 = sbr.rel target = $region3
    $region8: #{tpu_custom_call.1} parent=1 // loop_exit
      _

</llo_original>
